<compile_context>
chip_gen: v5e
topology: v5e:2x2
jax: 0.10.0
libtpu: 0.0.40
codegen_flags: <defaults>
</compile_context>

<pallas_src>
import functools

import jax
import jax.numpy as jnp
from jax.experimental import pallas as pl
from jax.experimental.pallas import tpu as pltpu


def _round_up(v, m):
    return (v + m - 1) // m * m


def _vmem_limit_bytes():
    """Generation-aware scoped-VMEM request (<= half of HW VMEM, <= 48 MiB)."""
    cap = 128 * 1024 * 1024
    try:
        info = pltpu.get_tpu_info()
        cap = int(getattr(info, "vmem_capacity_bytes", cap))
    except Exception:
        pass
    return min(cap // 2, 48 * 1024 * 1024)


def _pick_tile(dim_rounded, unit, cap):
    """Largest multiple of `unit` <= cap dividing dim_rounded -> (tile, padded_dim)."""
    if dim_rounded <= cap:
        return dim_rounded, dim_rounded
    t = (cap // unit) * unit
    while t > unit and dim_rounded % t:
        t -= unit
    if dim_rounded % t:
        return t, _round_up(dim_rounded, t)
    return t, dim_rounded


def _pick_bb(batch, max_bb=8):
    """Batch-block size: largest divisor of `batch` <= max_bb keeping grid >= 2."""
    best = 1
    for bb in range(1, min(batch, max_bb) + 1):
        if batch % bb == 0 and batch // bb >= 2:
            best = bb
    return best


# ----------------------------------------------------------------------------
# Tiled linear kernel (patch embedding): bf16 MXU, f32 accumulator, bias.
# ----------------------------------------------------------------------------
def _linear_kernel(x_ref, w_ref, b_ref, o_ref, acc_ref):
    @pl.when(pl.program_id(2) == 0)
    def _():
        acc_ref[...] = jnp.zeros_like(acc_ref)

    acc_ref[...] += jnp.dot(x_ref[...], w_ref[...],
                            preferred_element_type=jnp.float32)

    @pl.when(pl.program_id(2) == pl.num_programs(2) - 1)
    def _():
        o_ref[...] = (acc_ref[...] + b_ref[...]).astype(o_ref.dtype)


def linear(x, w, b, out_dtype=jnp.float32, cap_m=256, cap_n=512, cap_k=512):
    """y = x @ w + b ; x:(M,K) w:(>=K,N) (w may be pre-padded/bf16), b:(1,N)."""
    M, K = x.shape
    N = w.shape[1]
    Mr, Nr, Kr = _round_up(M, 8), _round_up(N, 128), _round_up(K, 128)
    tm, Mp = _pick_tile(Mr, 8, cap_m)
    tn, Np = _pick_tile(Nr, 128, cap_n)
    tk, Kp = _pick_tile(Kr, 128, cap_k)

    xp = x.astype(jnp.bfloat16)
    if (Mp, Kp) != (M, K):
        xp = jnp.pad(xp, ((0, Mp - M), (0, Kp - K)))
    wp = w if w.dtype == jnp.bfloat16 else w.astype(jnp.bfloat16)
    if wp.shape != (Kp, Np):
        wp = jnp.pad(wp, ((0, Kp - wp.shape[0]), (0, Np - wp.shape[1])))
    bp = jnp.asarray(b, jnp.float32).reshape(1, -1)
    if bp.shape[1] != Np:
        bp = jnp.pad(bp, ((0, 0), (0, Np - bp.shape[1])))

    out = pl.pallas_call(
        _linear_kernel,
        out_shape=jax.ShapeDtypeStruct((Mp, Np), out_dtype),
        grid=(Mp // tm, Np // tn, Kp // tk),
        in_specs=[pl.BlockSpec((tm, tk), lambda i, j, k: (i, k)),
                  pl.BlockSpec((tk, tn), lambda i, j, k: (k, j)),
                  pl.BlockSpec((1, tn), lambda i, j, k: (0, j))],
        out_specs=pl.BlockSpec((tm, tn), lambda i, j, k: (i, j)),
        scratch_shapes=[pltpu.VMEM((tm, tn), jnp.float32)],
        compiler_params=pltpu.CompilerParams(
            dimension_semantics=("parallel", "parallel", "arbitrary"),
            vmem_limit_bytes=_vmem_limit_bytes()),
    )(xp, wp, bp)
    if (Mp, Np) != (M, N):
        out = out[:M, :N]
    return out


# ----------------------------------------------------------------------------
# Fused transformer trunk kernel: all blocks in one pallas_call.
#   grid step = Bb batch elements; residual stream in f32 VMEM scratch;
#   last block computes proj/MLP only for the CLS rows and emits (Bb, 1, D).
# ----------------------------------------------------------------------------
def _ln(x, g, eps):
    mu = jnp.mean(x, axis=-1, keepdims=True)
    xc = x - mu
    var = jnp.mean(xc * xc, axis=-1, keepdims=True)
    return xc * jax.lax.rsqrt(var + eps) * g


def _trunk_kernel(x_ref, g1_ref, wqkv_ref, wproj_ref, g2_ref, wf1_ref, wf2_ref,
                  cls_ref, resid_ref, *, depth, nh, dh, Bb, Sp, valid_s,
                  scale, eps):
    D = x_ref.shape[-1]
    inner = nh * dh
    M = Bb * Sp

    resid_ref[...] = x_ref[...].reshape(M, D).astype(jnp.float32)

    # Key-padding penalty (pad columns excluded from every softmax).
    if valid_s < Sp:
        col = jax.lax.broadcasted_iota(jnp.int32, (1, Sp), 1)
        penalty = jnp.where(col < valid_s, 0.0, -1e30).astype(jnp.float32)
    else:
        penalty = None

    def softmax(s):
        if penalty is not None:
            s = s + penalty
        s = s - jnp.max(s, axis=-1, keepdims=True)
        p = jnp.exp(s)
        return p * pl.reciprocal(jnp.sum(p, axis=-1, keepdims=True), approx=True)

    def qkv_proj(x, d):
        h = _ln(x, g1_ref[d], eps).astype(jnp.bfloat16)
        qkv = jnp.dot(h, wqkv_ref[d], preferred_element_type=jnp.float32)
        return qkv.astype(jnp.bfloat16).reshape(Bb, Sp, 3 * inner)

    # ---------- blocks 0 .. depth-2 : full sequence ----------
    for d in range(depth - 1):
        x = resid_ref[...]                                       # (M, D) f32
        qkv = qkv_proj(x, d)
        wproj_d = wproj_ref[d]                                   # (inner, D)
        attn_proj = jnp.zeros((M, D), jnp.float32)
        for hh in range(nh):
            q = qkv[:, :, hh * dh:(hh + 1) * dh]
            k = qkv[:, :, inner + hh * dh:inner + (hh + 1) * dh]
            v = qkv[:, :, 2 * inner + hh * dh:2 * inner + (hh + 1) * dh]
            s = jnp.einsum('bqd,bkd->bqk', q, k,
                           preferred_element_type=jnp.float32) * scale
            p = softmax(s).astype(jnp.bfloat16)
            ho = jnp.einsum('bqk,bkd->bqd', p, v,
                            preferred_element_type=jnp.float32)  # (Bb,Sp,dh)
            attn_proj += jnp.dot(ho.reshape(M, dh).astype(jnp.bfloat16),
                                 wproj_d[hh * dh:(hh + 1) * dh, :],
                                 preferred_element_type=jnp.float32)
        x = x + attn_proj
        h2 = _ln(x, g2_ref[d], eps).astype(jnp.bfloat16)
        g = jnp.dot(h2, wf1_ref[d], preferred_element_type=jnp.float32)
        g = jax.nn.gelu(g, approximate=True).astype(jnp.bfloat16)
        x = x + jnp.dot(g, wf2_ref[d], preferred_element_type=jnp.float32)
        resid_ref[...] = x

    # ---------- last block : K/V over all rows, rest CLS-rows only ----------
    d = depth - 1
    x = resid_ref[...]
    qkv = qkv_proj(x, d)
    wproj_d = wproj_ref[d]
    x_cls = x.reshape(Bb, Sp, D)[:, 0, :]                        # (Bb, D)
    q_cls = qkv[:, 0:1, :]                                       # (Bb, 1, 3*inner)
    proj = jnp.zeros((Bb, D), jnp.float32)
    for hh in range(nh):
        q = q_cls[:, :, hh * dh:(hh + 1) * dh]                   # (Bb, 1, dh)
        k = qkv[:, :, inner + hh * dh:inner + (hh + 1) * dh]
        v = qkv[:, :, 2 * inner + hh * dh:2 * inner + (hh + 1) * dh]
        s = jnp.einsum('bqd,bkd->bqk', q, k,
                       preferred_element_type=jnp.float32) * scale  # (Bb,1,Sp)
        p = softmax(s).astype(jnp.bfloat16)
        ho = jnp.einsum('bqk,bkd->bqd', p, v,
                        preferred_element_type=jnp.float32)          # (Bb,1,dh)
        proj += jnp.dot(ho.reshape(Bb, dh).astype(jnp.bfloat16),
                        wproj_d[hh * dh:(hh + 1) * dh, :],
                        preferred_element_type=jnp.float32)
    x1 = x_cls + proj                                            # (Bb, D)
    h2 = _ln(x1, g2_ref[d], eps).astype(jnp.bfloat16)
    g = jnp.dot(h2, wf1_ref[d], preferred_element_type=jnp.float32)
    g = jax.nn.gelu(g, approximate=True).astype(jnp.bfloat16)
    x2 = x1 + jnp.dot(g, wf2_ref[d], preferred_element_type=jnp.float32)
    cls_ref[...] = x2.reshape(Bb, 1, D).astype(cls_ref.dtype)


def transformer_trunk(x, blocks, *, nh, dh, valid_s, bb, eps=1e-5):
    B, Sp, D = x.shape
    depth = blocks["ln1_g"].shape[0]
    inner = nh * dh
    mlp_hidden = blocks["w_fc1"].shape[-1]
    assert B % bb == 0

    def wspec(shape):
        nd = len(shape)
        return pl.BlockSpec(shape, lambda b, _nd=nd: (0,) * _nd)

    kernel = functools.partial(
        _trunk_kernel, depth=depth, nh=nh, dh=dh, Bb=bb, Sp=Sp,
        valid_s=valid_s, scale=dh ** -0.5, eps=eps)

    cls = pl.pallas_call(
        kernel,
        out_shape=jax.ShapeDtypeStruct((B, 1, D), jnp.float32),
        grid=(B // bb,),
        in_specs=[
            pl.BlockSpec((bb, Sp, D), lambda b: (b, 0, 0)),
            wspec((depth, 1, D)),
            wspec((depth, D, 3 * inner)),
            wspec((depth, inner, D)),
            wspec((depth, 1, D)),
            wspec((depth, D, mlp_hidden)),
            wspec((depth, mlp_hidden, D)),
        ],
        out_specs=pl.BlockSpec((bb, 1, D), lambda b: (b, 0, 0)),
        scratch_shapes=[pltpu.VMEM((bb * Sp, D), jnp.float32)],
        compiler_params=pltpu.CompilerParams(
            dimension_semantics=("parallel",),
            vmem_limit_bytes=_vmem_limit_bytes()),
    )(x, blocks["ln1_g"], blocks["w_qkv"], blocks["w_proj"],
      blocks["ln2_g"], blocks["w_fc1"], blocks["w_fc2"])
    return cls.reshape(B, D)


# ----------------------------------------------------------------------------
# Fused final-LN + both MLP3 heads (dropout = identity; lane-dense outputs).
# ----------------------------------------------------------------------------
def _heads_kernel(x_ref, g_ref,
                  cw1, cb1, cw2, cb2, cw3, cb3,
                  tw1, tb1, tw2, tb2, tw3, tb3,
                  cls_out, tr_out, *, eps):
    x = x_ref[...].astype(jnp.float32)
    h = _ln(x, g_ref[...], eps)

    def mlp3(h0, w1, b1, w2, b2, w3, b3):
        a1 = jnp.dot(h0.astype(jnp.bfloat16), w1[...],
                     preferred_element_type=jnp.float32) + b1[...]
        a1 = jnp.maximum(a1, 0.0)
        a2 = jnp.dot(a1.astype(jnp.bfloat16), w2[...],
                     preferred_element_type=jnp.float32) + b2[...]
        a2 = jnp.maximum(a2, 0.0)
        return jnp.dot(a2.astype(jnp.bfloat16), w3[...],
                       preferred_element_type=jnp.float32) + b3[...]

    cls_out[...] = mlp3(h, cw1, cb1, cw2, cb2, cw3, cb3).astype(cls_out.dtype)
    tr_out[...] = mlp3(h, tw1, tb1, tw2, tb2, tw3, tb3).astype(tr_out.dtype)


def heads_forward(cls_feat, params, *, num_classes, num_transforms, eps=1e-5):
    B, _ = cls_feat.shape
    ch, th = params["cls_head"], params["tr_head"]
    nc_p = ch["w3"].shape[1]            # padded to a multiple of 128
    nt_p = th["w3"].shape[1]
    logits_p, tr_p = pl.pallas_call(
        functools.partial(_heads_kernel, eps=eps),
        out_shape=(jax.ShapeDtypeStruct((B, nc_p), jnp.float32),
                   jax.ShapeDtypeStruct((B, nt_p), jnp.float32)),
        compiler_params=pltpu.CompilerParams(
            vmem_limit_bytes=_vmem_limit_bytes()),
    )(cls_feat, params["norm_g"],
      ch["w1"], ch["b1"], ch["w2"], ch["b2"], ch["w3"], ch["b3"],
      th["w1"], th["b1"], th["w2"], th["b2"], th["w3"], th["b3"])
    return logits_p[:, :num_classes], tr_p[:, :num_transforms]


# ----------------------------------------------------------------------------
# Parameter initialization (deterministic; shapes follow the module __init__).
# Matmul weights stored bf16 (pre-padded where useful); LN gains/biases f32.
# Per-block trunk weights are STACKED with a leading depth axis.
# ----------------------------------------------------------------------------
def init_params(key, *, img_size, patch_size, in_chans, embed_dim, depth,
                head_dim, mlp_ratio, hidden_dim, num_classes, num_transforms):
    num_patches = (img_size // patch_size) ** 2
    num_heads = embed_dim // head_dim
    inner = num_heads * head_dim
    mlp_hidden = int(embed_dim * mlp_ratio)
    patch_dim = in_chans * patch_size * patch_size
    patch_dim_p = _round_up(patch_dim, 128)

    keys = iter(jax.random.split(key, 64))

    def n(shape, std=0.02, dtype=jnp.bfloat16):
        return (std * jax.random.normal(next(keys), shape, jnp.float32)).astype(dtype)

    # Patch projection weight: pre-padded on K (-> multiple of 128), bf16.
    patch_w = n((patch_dim, embed_dim), dtype=jnp.float32)
    patch_w = jnp.pad(patch_w, ((0, patch_dim_p - patch_dim), (0, 0))).astype(jnp.bfloat16)

    params = {
        "patch_w": patch_w,
        "patch_b": jnp.zeros((1, embed_dim), jnp.float32),
        "cls_token": n((1, 1, embed_dim), dtype=jnp.float32),
        "pos_embed": n((1, 1 + num_patches, embed_dim), dtype=jnp.float32),
        "norm_g": jnp.ones((1, embed_dim), jnp.float32),
        "blocks": {
            "ln1_g": jnp.ones((depth, 1, embed_dim), jnp.float32),
            "w_qkv": n((depth, embed_dim, 3 * inner)),
            "w_proj": n((depth, inner, embed_dim)),
            "ln2_g": jnp.ones((depth, 1, embed_dim), jnp.float32),
            "w_fc1": n((depth, embed_dim, mlp_hidden)),
            "w_fc2": n((depth, mlp_hidden, embed_dim)),
        },
    }

    def mlp3_head(out_dim):
        out_p = _round_up(out_dim, 128)       # lane-dense head output
        w3 = n((hidden_dim, out_dim), dtype=jnp.float32)
        w3 = jnp.pad(w3, ((0, 0), (0, out_p - out_dim))).astype(jnp.bfloat16)
        return {
            "w1": n((embed_dim, hidden_dim)),
            "b1": jnp.zeros((1, hidden_dim), jnp.float32),
            "w2": n((hidden_dim, hidden_dim)),
            "b2": jnp.zeros((1, hidden_dim), jnp.float32),
            "w3": w3,
            "b3": jnp.zeros((1, out_p), jnp.float32),
        }

    params["cls_head"] = mlp3_head(num_classes)
    params["tr_head"] = mlp3_head(num_transforms)

    cfg = dict(patch_size=patch_size, embed_dim=embed_dim, num_heads=num_heads,
               head_dim=head_dim, depth=depth,
               num_classes=num_classes, num_transforms=num_transforms)
    return params, cfg


# ----------------------------------------------------------------------------
# Forward pass (TestTimeTrainer3fc.forward, aux_only=False, use_base_model=False)
# ----------------------------------------------------------------------------
def ttt3fc_forward(params, cfg, x_nchw):
    B, C, H, W = x_nchw.shape
    p = cfg["patch_size"]
    D = cfg["embed_dim"]
    nh, dh = cfg["num_heads"], cfg["head_dim"]

    # --- patch embedding (Conv2d k=p, stride=p == linear over flat patches) ---
    # TODO(synk): PatchEmbed(use_resnet_stem=True) conv stem is not defined in
    # the source snippet; a linear patch projection is used instead.
    N = (H // p) * (W // p)
    patches = (x_nchw.reshape(B, C, H // p, p, W // p, p)
               .transpose(0, 2, 4, 1, 3, 5)
               .reshape(B * N, C * p * p))
    tok = linear(patches, params["patch_w"], params["patch_b"],
                 out_dtype=jnp.float32).reshape(B, N, D)

    # --- cls token + positional embedding (f32); pad S up to a sublane mult ---
    cls = jnp.broadcast_to(params["cls_token"], (B, 1, D))
    xt = jnp.concatenate([cls, tok], axis=1) + params["pos_embed"]
    S = 1 + N
    Sp = _round_up(S, 8)
    if Sp != S:
        xt = jnp.pad(xt, ((0, 0), (0, Sp - S), (0, 0)))

    # --- fused transformer trunk (all blocks, batch-blocked, CLS output) ---
    bb = _pick_bb(B)
    cls_feat = transformer_trunk(xt, params["blocks"], nh=nh, dh=dh,
                                 valid_s=S, bb=bb)

    # --- final LayerNorm + both MLP3 heads (dropout = identity in eval) ---
    return heads_forward(cls_feat, params,
                         num_classes=cfg["num_classes"],
                         num_transforms=cfg["num_transforms"])


# ----------------------------------------------------------------------------
if __name__ == "__main__":
    # Small shapes consistent with the module (scaled down from 64/384/512):
    IMG, PATCH, CHANS = 16, 8, 3
    EMBED, HEAD_DIM, DEPTH, MLP_RATIO = 128, 64, 2, 4.0
    HIDDEN, NUM_CLASSES, NUM_TRANSFORMS = 128, 200, 4
    B = 2

    key = jax.random.PRNGKey(0)
    k_param, k_x = jax.random.split(key)
    params, cfg = init_params(
        k_param, img_size=IMG, patch_size=PATCH, in_chans=CHANS,
        embed_dim=EMBED, depth=DEPTH, head_dim=HEAD_DIM, mlp_ratio=MLP_RATIO,
        hidden_dim=HIDDEN, num_classes=NUM_CLASSES, num_transforms=NUM_TRANSFORMS)

    x = jax.random.normal(k_x, (B, CHANS, IMG, IMG), jnp.float32)  # NCHW input

    logits, transform_logits = ttt3fc_forward(params, cfg, x)
    jax.block_until_ready((logits, transform_logits))

    assert logits.shape == (B, NUM_CLASSES)
    assert transform_logits.shape == (B, NUM_TRANSFORMS)
    assert jnp.all(jnp.isfinite(logits)) and jnp.all(jnp.isfinite(transform_logits))
    print("KERNEL_OK")
</pallas_src>

<mosaic_0001>
module attributes {stable_mosaic.version = 11 : i64} {
  func.func @_linear_kernel(%arg0: i32, %arg1: i32, %arg2: i32, %arg3: memref<8x256xbf16, #tpu.memory_space<vmem>>, %arg4: memref<256x128xbf16, #tpu.memory_space<vmem>>, %arg5: memref<1x128xf32, #tpu.memory_space<vmem>>, %arg6: memref<8x128xf32, #tpu.memory_space<vmem>>, %arg7: memref<8x128xf32, #tpu.memory_space<vmem>>) attributes {dimension_semantics = [#tpu.dimension_semantics<parallel>, #tpu.dimension_semantics<parallel>, #tpu.dimension_semantics<arbitrary>], iteration_bounds = array<i64: 1, 1, 1>, scalar_prefetch = 0 : i64, scratch_operands = 1 : i64, tpu.core_type = #tpu.core_type<tc>, window_params = [{transform_indices = @transform_0, window_bounds = array<i64: 8, 256>}, {transform_indices = @transform_1, window_bounds = array<i64: 256, 128>}, {transform_indices = @transform_2, window_bounds = array<i64: 1, 128>}, {transform_indices = @transform_3, window_bounds = array<i64: 8, 128>}]} {
    %c0_i32 = arith.constant 0 : i32
    %0 = arith.cmpi eq, %arg2, %c0_i32 : i32
    %1 = arith.extui %0 : i1 to i32
    %c0_i32_0 = arith.constant 0 : i32
    %2 = arith.cmpi ne, %1, %c0_i32_0 : i32
    scf.if %2 {
      %cst_10 = arith.constant 0.000000e+00 : f32
      %12 = vector.broadcast %cst_10 : f32 to vector<8x128xf32>
      %c0_11 = arith.constant 0 : index
      %c0_12 = arith.constant 0 : index
      %13 = vector.load %arg7[%c0_11, %c0_12] : memref<8x128xf32, #tpu.memory_space<vmem>>, vector<8x128xf32>
      tpu.vector_store %arg7[%c0_11, %c0_12], %12 {strides = array<i32>} : memref<8x128xf32, #tpu.memory_space<vmem>>, vector<8x128xf32>,
    } else {
    }
    %c0 = arith.constant 0 : index
    %c0_1 = arith.constant 0 : index
    %3 = vector.load %arg7[%c0, %c0_1] : memref<8x128xf32, #tpu.memory_space<vmem>>, vector<8x128xf32>
    %c0_2 = arith.constant 0 : index
    %c0_3 = arith.constant 0 : index
    %4 = vector.load %arg3[%c0_2, %c0_3] : memref<8x256xbf16, #tpu.memory_space<vmem>>, vector<8x256xbf16>
    %c0_4 = arith.constant 0 : index
    %c0_5 = arith.constant 0 : index
    %5 = vector.load %arg4[%c0_4, %c0_5] : memref<256x128xbf16, #tpu.memory_space<vmem>>, vector<256x128xbf16>
    %cst = arith.constant dense<0.000000e+00> : vector<8x128xf32>
    %6 = tpu.matmul %4, %5, %cst {dimension_numbers = #tpu.dot_dimension_numbers<[1], [0], [0], [1], [0, 0, 1, 1], [], []>} : vector<8x256xbf16>, vector<256x128xbf16>, vector<8x128xf32> -> vector<8x128xf32>
    %7 = arith.addf %3, %6 : vector<8x128xf32>
    %c0_6 = arith.constant 0 : index
    %c0_7 = arith.constant 0 : index
    %8 = vector.load %arg7[%c0_6, %c0_7] : memref<8x128xf32, #tpu.memory_space<vmem>>, vector<8x128xf32>
    tpu.vector_store %arg7[%c0_6, %c0_7], %7 {strides = array<i32>} : memref<8x128xf32, #tpu.memory_space<vmem>>, vector<8x128xf32>,
    %c0_i32_8 = arith.constant 0 : i32
    %9 = arith.cmpi eq, %arg2, %c0_i32_8 : i32
    %10 = arith.extui %9 : i1 to i32
    %c0_i32_9 = arith.constant 0 : i32
    %11 = arith.cmpi ne, %10, %c0_i32_9 : i32
    scf.if %11 {
      %c0_10 = arith.constant 0 : index
      %c0_11 = arith.constant 0 : index
      %12 = vector.load %arg7[%c0_10, %c0_11] : memref<8x128xf32, #tpu.memory_space<vmem>>, vector<8x128xf32>
      %c0_12 = arith.constant 0 : index
      %c0_13 = arith.constant 0 : index
      %13 = vector.load %arg5[%c0_12, %c0_13] : memref<1x128xf32, #tpu.memory_space<vmem>>, vector<1x128xf32>
      %14 = vector.broadcast %13 : vector<1x128xf32> to vector<8x128xf32>
      %15 = arith.addf %12, %14 : vector<8x128xf32>
      %c0_14 = arith.constant 0 : index
      %c0_15 = arith.constant 0 : index
      %16 = vector.load %arg6[%c0_14, %c0_15] : memref<8x128xf32, #tpu.memory_space<vmem>>, vector<8x128xf32>
      tpu.vector_store %arg6[%c0_14, %c0_15], %15 {strides = array<i32>} : memref<8x128xf32, #tpu.memory_space<vmem>>, vector<8x128xf32>,
    } else {
    }
    return
  }
  func.func @transform_0(%arg0: i32, %arg1: i32, %arg2: i32) -> (i32, i32) {
    %c0_i32 = arith.constant 0 : i32
    return %arg0, %arg2 : i32, i32
  }
  func.func @transform_1(%arg0: i32, %arg1: i32, %arg2: i32) -> (i32, i32) {
    %c0_i32 = arith.constant 0 : i32
    return %arg2, %arg1 : i32, i32
  }
  func.func @transform_2(%arg0: i32, %arg1: i32, %arg2: i32) -> (i32, i32) {
    %c0_i32 = arith.constant 0 : i32
    %c0_i32_0 = arith.constant 0 : i32
    return %c0_i32, %arg1 : i32, i32
  }
  func.func @transform_3(%arg0: i32, %arg1: i32, %arg2: i32) -> (i32, i32) {
    %c0_i32 = arith.constant 0 : i32
    return %arg0, %arg1 : i32, i32
  }
}

</mosaic_0001>

<llo_original>
// kernel: tpu_custom_call.1
$region0: #{tpu_custom_call.1}
  #allocation0 [shape = 'u32[]', space=smem, size = 0x4, offset = 0x4, fixed_abs, tag = 'smem constant byte address 0x4 - core index']
  #allocation1 [shape = 'u32[72,128]{1,0:T(1,128)}', space=vmem, size = 0x9000, scoped, tag = 'internal scratch']
  #allocation2 [shape = 'f32[8,128]{1,0:T(8,128)}', space=vmem, size = 0x1000, scoped, tag = 'scratch operand']
  %s0 = inlined_call_operand.hbm [shape: bf16[8,256], index: 0, kind: input, shape index: {}]
  %s1 = inlined_call_operand.hbm [shape: bf16[256,128], index: 1, kind: input, shape index: {}]
  %s2 = inlined_call_operand.vmem [shape: f32[1,128], index: 2, kind: input, shape index: {}]
  %s3 = inlined_call_operand.hbm [shape: f32[8,128], index: 3, kind: output, shape index: {}]
  %s4 = sld [smem:[#allocation0]]
  $region38: #{tpu_custom_call.1} parent=0
    _
  %s6 = ssub.s32 1, %s4
  %s7 = scalar_select 0, %s6, %s4
  $region1: #{tpu_custom_call.1} parent=0
    #allocation3 [shape = 'u8[4096]{0}', space=vmem, size = 0x1000, scoped, tag = 'input window, operand 0, single buffered']
    #allocation4 [shape = 's32[1]{0}', space=sflag, size = 0x4, scoped, tag = 'scoped memory for tpu_custom_call.1']
    #allocation5 [shape = 's32[1]{0}', space=sflag, size = 0x4, scoped, tag = 'scoped memory for tpu_custom_call.1']
    #allocation6 [shape = 'u8[65536]{0}', space=vmem, size = 0x10000, scoped, tag = 'input window, operand 1, single buffered']
    #allocation7 [shape = 's32[1]{0}', space=sflag, size = 0x4, scoped, tag = 'scoped memory for tpu_custom_call.1']
    #allocation8 [shape = 'u8[4096]{0}', space=vmem, size = 0x1000, scoped, tag = 'output window, operand 0, single buffered']
    %8 = vsyncpa [#allocation4], 0
    %9 = vsyncpa [#allocation7], 0
    %10 = vsyncpa [#allocation5], 0
    // Predicated region
    $region2: #{tpu_custom_call.1} parent=1 // pred_check
      _
    $region3: #{tpu_custom_call.1} parent=1 // pred_check_branch
      %12 = sbr.rel (0) target = $region5
    $region4: #{tpu_custom_call.1} parent=1 // pred_region
      %14 = vsyncadd [#allocation4], 0
      %s16 = sshll.u32 %s0, 4
      %s17 = int_to_ptr.hbm [resolvable:$true] %s16
      %s18 = sshll.u32 [#allocation3], 4
      %s19 = int_to_ptr.vmem [resolvable:$true] %s18
      %21 = dma.hbm_to_vmem [thread:$0]  %s17, 128, %s19, [#allocation4]
    $region5: #{tpu_custom_call.1} parent=1 // pred_fallthru
      _
    // Predicated region
    $region6: #{tpu_custom_call.1} parent=1 // pred_check
      _
    $region7: #{tpu_custom_call.1} parent=1 // pred_check_branch
      %23 = sbr.rel (0) target = $region9
    $region8: #{tpu_custom_call.1} parent=1 // pred_region
      %25 = vsyncadd [#allocation7], 0
      %s26 = sshll.u32 %s1, 4
      %s27 = int_to_ptr.hbm [resolvable:$true] %s26
      %s28 = sshll.u32 [#allocation6], 4
      %s29 = int_to_ptr.vmem [resolvable:$true] %s28
      %34 = dma.hbm_to_vmem [thread:$0]  %s27, 2048, %s29, [#allocation7], 64, 64, 4
    $region9: #{tpu_custom_call.1} parent=1 // pred_fallthru
      _
    // Predicated region
    $region10: #{tpu_custom_call.1} parent=1 // pred_check
      _
    $region11: #{tpu_custom_call.1} parent=1 // pred_check_branch
      %36 = sbr.rel (0) target = $region13
    $region12: #{tpu_custom_call.1} parent=1 // pred_region
      _
    $region13: #{tpu_custom_call.1} parent=1 // pred_fallthru
      _
    // Predicated region
    $region14: #{tpu_custom_call.1} parent=1 // pred_check
      _
    $region15: #{tpu_custom_call.1} parent=1 // pred_check_branch
      %38 = sbr.rel (0) target = $region17
    $region16: #{tpu_custom_call.1} parent=1 // pred_region
      %40 = dma.done [#allocation4], 128
    $region17: #{tpu_custom_call.1} parent=1 // pred_fallthru
      _
    // Predicated region
    $region18: #{tpu_custom_call.1} parent=1 // pred_check
      _
    $region19: #{tpu_custom_call.1} parent=1 // pred_check_branch
      %42 = sbr.rel (0) target = $region21
    $region20: #{tpu_custom_call.1} parent=1 // pred_region
      %44 = dma.done [#allocation7], 2048
    $region21: #{tpu_custom_call.1} parent=1 // pred_fallthru
      _
    %p45 = scmp.eq.s32.totalorder 0, 0
    // Predicated region
    $region22: #{tpu_custom_call.1} parent=1 // pred_check
      %p46 = pneg %p45
    $region23: #{tpu_custom_call.1} parent=1 // pred_check_branch
      %48 = sbr.rel (%p46) target = $region25
    $region24: #{tpu_custom_call.1} parent=1 // pred_region
      %49 = vst [vmem:[#allocation2] sm:$0xff] 0.0
    $region25: #{tpu_custom_call.1} parent=1 // pred_fallthru
      _
    %v50 = vld [vmem:[#allocation2] sm:$0xff]
    %v51 = vld [vmem:[#allocation3] sm:$0xff]
    %v52 = vld [vmem:[#allocation6] sm:$0xf]
    %v53 = vld [vmem:[#allocation6 + $0x4] sm:$0xf]
    %v54 = vld [vmem:[#allocation6 + $0x8] sm:$0xf]
    %v55 = vld [vmem:[#allocation6 + $0xc] sm:$0xf]
    %v56 = vld [vmem:[#allocation6 + $0x10] sm:$0xf]
    %v57 = vld [vmem:[#allocation6 + $0x14] sm:$0xf]
    %v58 = vld [vmem:[#allocation6 + $0x18] sm:$0xf]
    %v59 = vld [vmem:[#allocation6 + $0x1c] sm:$0xf]
    %v60 = vld [vmem:[#allocation6 + $0x20] sm:$0xf]
    %v61 = vld [vmem:[#allocation6 + $0x24] sm:$0xf]
    %v62 = vld [vmem:[#allocation6 + $0x28] sm:$0xf]
    %v63 = vld [vmem:[#allocation6 + $0x2c] sm:$0xf]
    %v64 = vld [vmem:[#allocation6 + $0x30] sm:$0xf]
    %v65 = vld [vmem:[#allocation6 + $0x34] sm:$0xf]
    %v66 = vld [vmem:[#allocation6 + $0x38] sm:$0xf]
    %v67 = vld [vmem:[#allocation6 + $0x3c] sm:$0xf]
    %v68 = vld [vmem:[#allocation6 + $0x40] sm:$0xf]
    %v69 = vld [vmem:[#allocation6 + $0x44] sm:$0xf]
    %v70 = vld [vmem:[#allocation6 + $0x48] sm:$0xf]
    %v71 = vld [vmem:[#allocation6 + $0x4c] sm:$0xf]
    %v72 = vld [vmem:[#allocation6 + $0x50] sm:$0xf]
    %v73 = vld [vmem:[#allocation6 + $0x54] sm:$0xf]
    %v74 = vld [vmem:[#allocation6 + $0x58] sm:$0xf]
    %v75 = vld [vmem:[#allocation6 + $0x5c] sm:$0xf]
    %v76 = vld [vmem:[#allocation6 + $0x60] sm:$0xf]
    %v77 = vld [vmem:[#allocation6 + $0x64] sm:$0xf]
    %v78 = vld [vmem:[#allocation6 + $0x68] sm:$0xf]
    %v79 = vld [vmem:[#allocation6 + $0x6c] sm:$0xf]
    %v80 = vld [vmem:[#allocation6 + $0x70] sm:$0xf]
    %v81 = vld [vmem:[#allocation6 + $0x74] sm:$0xf]
    %v82 = vld [vmem:[#allocation6 + $0x78] sm:$0xf]
    %v83 = vld [vmem:[#allocation6 + $0x7c] sm:$0xf]
    %v85 = vunpack.c.l.b16 %v51
    %v86 = vunpack.c.h.b16 %v51
    %v87 = vpack.c.b16 %v85, %v85
    %v88 = vpack.c.b16 %v86, %v86
    %v123 = vunpack.c.l.b16 %v52
    %v124 = vunpack.c.l.b16 %v53
    %v125 = vunpack.c.l.b16 %v54
    %v126 = vunpack.c.l.b16 %v55
    %v127 = vunpack.c.l.b16 %v56
    %v128 = vunpack.c.l.b16 %v57
    %v129 = vunpack.c.l.b16 %v58
    %v130 = vunpack.c.l.b16 %v59
    %v131 = vunpack.c.l.b16 %v60
    %v132 = vunpack.c.l.b16 %v61
    %v133 = vunpack.c.l.b16 %v62
    %v134 = vunpack.c.l.b16 %v63
    %v135 = vunpack.c.l.b16 %v64
    %v136 = vunpack.c.l.b16 %v65
    %v137 = vunpack.c.l.b16 %v66
    %v138 = vunpack.c.l.b16 %v67
    %v139 = vunpack.c.l.b16 %v68
    %v140 = vunpack.c.l.b16 %v69
    %v141 = vunpack.c.l.b16 %v70
    %v142 = vunpack.c.l.b16 %v71
    %v143 = vunpack.c.l.b16 %v72
    %v144 = vunpack.c.l.b16 %v73
    %v145 = vunpack.c.l.b16 %v74
    %v146 = vunpack.c.l.b16 %v75
    %v147 = vunpack.c.l.b16 %v76
    %v148 = vunpack.c.l.b16 %v77
    %v149 = vunpack.c.l.b16 %v78
    %v150 = vunpack.c.l.b16 %v79
    %v151 = vunpack.c.l.b16 %v80
    %v152 = vunpack.c.l.b16 %v81
    %v153 = vunpack.c.l.b16 %v82
    %v154 = vunpack.c.l.b16 %v83
    %v155 = vpack.c.b16 %v124, %v123
    %v156 = vpack.c.b16 %v126, %v125
    %v157 = vpack.c.b16 %v128, %v127
    %v158 = vpack.c.b16 %v130, %v129
    %v159 = vpack.c.b16 %v132, %v131
    %v160 = vpack.c.b16 %v134, %v133
    %v161 = vpack.c.b16 %v136, %v135
    %v162 = vpack.c.b16 %v138, %v137
    %v163 = vpack.c.b16 %v140, %v139
    %v164 = vpack.c.b16 %v142, %v141
    %v165 = vpack.c.b16 %v144, %v143
    %v166 = vpack.c.b16 %v146, %v145
    %v167 = vpack.c.b16 %v148, %v147
    %v168 = vpack.c.b16 %v150, %v149
    %v169 = vpack.c.b16 %v152, %v151
    %v170 = vpack.c.b16 %v154, %v153
    %187 = vmatpush.bf16.msra.mxu0 %v162
    %188 = vmatpush.bf16.msra.mxu0 %v161
    %189 = vmatpush.bf16.msra.mxu0 %v160
    %190 = vmatpush.bf16.msra.mxu0 %v159
    %191 = vmatpush.bf16.msra.mxu0 %v158
    %192 = vmatpush.bf16.msra.mxu0 %v157
    %193 = vmatpush.bf16.msra.mxu0 %v156
    %194 = vmatpush.bf16.msra.mxu0 %v155
    %195 = vmatmul.bf16.gmra.mxu0 %v87
    %v196 = vpop.f32.mrf.mxu0
    %v197 = vadd.f32 0.0, %v196
    %v198 = vpop.f32.mrf.mxu0
    %199 = vdwg.mxu0
    %200 = vmatpush.bf16.msra.mxu0 %v170
    %201 = vmatpush.bf16.msra.mxu0 %v169
    %202 = vmatpush.bf16.msra.mxu0 %v168
    %203 = vmatpush.bf16.msra.mxu0 %v167
    %204 = vmatpush.bf16.msra.mxu0 %v166
    %205 = vmatpush.bf16.msra.mxu0 %v165
    %206 = vmatpush.bf16.msra.mxu0 %v164
    %207 = vmatpush.bf16.msra.mxu0 %v163
    %208 = vmatmul.bf16.gmra.mxu0 %v88
    %v209 = vpop.f32.mrf.mxu0
    %v210 = vadd.f32 %v197, %v209
    %v211 = vpop.f32.mrf.mxu0
    %212 = vdwg.mxu0
    %v213 = vadd.f32 %v50, %v210
    %214 = vst [vmem:[#allocation2] sm:$0xff] %v213
    // Predicated region
    $region26: #{tpu_custom_call.1} parent=1 // pred_check
      %p215 = pneg %p45
    $region27: #{tpu_custom_call.1} parent=1 // pred_check_branch
      %217 = sbr.rel (%p215) target = $region29
    $region28: #{tpu_custom_call.1} parent=1 // pred_region
      %v218 = vld [vmem:[#allocation2] sm:$0xff]
      %v219 = vld [vmem:[%s2] sm:$0x1]
      %v221 = vperm.slane %v219, 0
      %v223 = vadd.f32 %v218, %v221
      %224 = vst [vmem:[#allocation8] sm:$0xff] %v223
    $region29: #{tpu_custom_call.1} parent=1 // pred_fallthru
      _
    // Predicated region
    $region30: #{tpu_custom_call.1} parent=1 // pred_check
      _
    $region31: #{tpu_custom_call.1} parent=1 // pred_check_branch
      %226 = sbr.rel (0) target = $region33
    $region32: #{tpu_custom_call.1} parent=1 // pred_region
      %228 = vsyncadd [#allocation5], 0
      %s230 = sshll.u32 [#allocation8], 4
      %s231 = int_to_ptr.vmem [resolvable:$true] %s230
      %s232 = sshll.u32 %s3, 4
      %s233 = int_to_ptr.hbm [resolvable:$true] %s232
      %235 = dma.vmem_to_hbm [thread:$0]  %s231, 128, %s233, [#allocation5]
    $region33: #{tpu_custom_call.1} parent=1 // pred_fallthru
      _
    // Predicated region
    $region34: #{tpu_custom_call.1} parent=1 // pred_check
      _
    $region35: #{tpu_custom_call.1} parent=1 // pred_check_branch
      %237 = sbr.rel (0) target = $region37
    $region36: #{tpu_custom_call.1} parent=1 // pred_region
      %239 = dma.done [#allocation5], 128
    $region37: #{tpu_custom_call.1} parent=1 // pred_fallthru
      _
    %240 = vsyncpa [#allocation4], 1
    %241 = vsyncpa [#allocation7], 1
    %242 = vsyncpa [#allocation5], 1

</llo_original>
